<compile_context>
chip_gen: v5e
topology: v5e:2x2
jax: 0.10.0
libtpu: 0.0.40
codegen_flags: <defaults>
</compile_context>

<pallas_src>
import math

import jax
import jax.numpy as jnp
from jax import lax
from jax.experimental import pallas as pl
from jax.experimental.pallas import tpu as pltpu


def _linear_kernel(x_ref, w_ref, b_ref, o_ref):
    """One batch tile: [TB, F] x [2, F] (contract F) + [1, 2] -> [TB, 2]."""
    x = x_ref[...]                        # [TB, F]
    w = w_ref[...]                        # [2, F]  lane-dense (PyTorch layout)
    b = b_ref[...]                        # [1, 2]
    acc = lax.dot_general(                # MXU matmul, explicit f32 accumulate
        x, w,
        dimension_numbers=(((1,), (1,)), ((), ())),
        preferred_element_type=jnp.float32,
    )                                     # [TB, 2]
    # NOTE: [TB, 2] stores lower to masked vst.msk partial stores; that's fine —
    # writeback is tiny vs. the x reads, so we deliberately do NOT pad N to 128.
    o_ref[...] = (acc + b.astype(jnp.float32)).astype(o_ref.dtype)


def _pick_batch_tile(B, F, itemsize, max_tb=1024,
                     vmem_budget_bytes=24 * 1024 * 1024):
    """Largest batch tile such that 2 double-buffered x tiles fit a conservative
    VMEM budget (safe under the 32 MiB default scoped limit on v5e/v6e/v7x).
    Raising vmem_limit_bytes in CompilerParams is a further lever on v6e/v5e
    (128 MiB physical) if F is huge, but is not needed for typical num_feats."""
    if B <= max_tb:
        return B                                    # full-dim block is always legal
    rows_fit = vmem_budget_bytes // (2 * F * itemsize)
    return int(min(max_tb, max(8, (rows_fit // 8) * 8)))  # multiple of 8 (sublanes)


def linear_qn_forward_pallas(x, weight, bias, *, max_tb=1024):
    """Tiled Pallas forward.  x: [B, F], weight: [2, F] (PyTorch layout), bias: [2]."""
    B, F = x.shape
    itemsize = jnp.dtype(x.dtype).itemsize
    tb = _pick_batch_tile(B, F, itemsize, max_tb=max_tb)
    grid = (pl.cdiv(B, tb),)              # ragged last block is masked by Pallas
    b2d = bias.reshape(1, 2)

    cost = pl.CostEstimate(
        flops=4 * B * F,                  # 2 * B * 2 * F MACs
        transcendentals=0,
        bytes_accessed=(B * F + 2 * F + B * 2) * itemsize + 2 * jnp.dtype(bias.dtype).itemsize,
    )

    return pl.pallas_call(
        _linear_kernel,
        out_shape=jax.ShapeDtypeStruct((B, 2), x.dtype),
        grid_spec=pl.GridSpec(
            grid=grid,
            in_specs=[
                pl.BlockSpec((tb, F), lambda i: (i, 0)),   # streamed batch tile
                pl.BlockSpec((2, F), lambda i: (0, 0)),    # resident weight (lane-dense)
                pl.BlockSpec((1, 2), lambda i: (0, 0)),    # resident bias
            ],
            out_specs=pl.BlockSpec((tb, 2), lambda i: (i, 0)),
        ),
        compiler_params=pltpu.CompilerParams(
            dimension_semantics=("parallel",),             # shard batch across TCs (v7x)
        ),
        cost_estimate=cost,
    )(x, weight, b2d)


def linear_qn_forward(x, weight, bias, *, min_pallas_rows=64, max_tb=1024):
    """Pallas equivalent of LinearQN.forward_raw with a small-batch fast path.

    For the module's actual shapes (B ~ tens of candidate pairs, F = num_feats),
    a Pallas launch is pure overhead, so tiny batches go through plain XLA.
    """
    B, _ = x.shape
    if B < min_pallas_rows:
        return x @ weight.T + bias
    return linear_qn_forward_pallas(x, weight, bias, max_tb=max_tb)


if __name__ == "__main__":
    # TODO(synk): tensor_form / process_input_data (feature-dict flattening) are
    # host-side Python glue with no Pallas equivalent; synthetic batches are used.
    key = jax.random.PRNGKey(0)
    kx, kw, kb, kx2 = jax.random.split(key, 4)

    F = 32                                 # num_feats
    # nn.Linear default init: U(-1/sqrt(fan_in), 1/sqrt(fan_in)), PyTorch layout.
    bound = 1.0 / math.sqrt(F)
    weight = jax.random.uniform(kw, (2, F), jnp.float32, -bound, bound)
    bias = jax.random.uniform(kb, (2,), jnp.float32, -bound, bound)

    # (a) Module-sized batch (B=8): wrapper routes around Pallas (launch overhead
    #     dwarfs ~1k FLOPs), plain XLA path, same semantics.
    x_small = jax.random.normal(kx, (8, F), dtype=jnp.float32)
    y_small = jax.block_until_ready(linear_qn_forward(x_small, weight, bias))
    assert y_small.shape == (8, 2)
    assert jnp.allclose(y_small, x_small @ weight.T + bias, atol=1e-5, rtol=1e-5)

    # (b) Larger batch exercising the tiled, pipelined Pallas kernel
    #     (B=1024, TB=512 -> 2 grid steps, weight/bias resident).
    B = 1024
    x = jax.random.normal(kx2, (B, F), dtype=jnp.float32)
    y = jax.block_until_ready(linear_qn_forward_pallas(x, weight, bias, max_tb=512))
    y_ref = x @ weight.T + bias
    assert y.shape == (B, 2)
    assert jnp.allclose(y, y_ref, atol=1e-5, rtol=1e-5)

    print("KERNEL_OK")
</pallas_src>

<mosaic_0001>
module attributes {stable_mosaic.version = 11 : i64} {
  func.func @_linear_kernel(%arg0: i32, %arg1: memref<512x32xf32, #tpu.memory_space<vmem>>, %arg2: memref<2x32xf32, #tpu.memory_space<vmem>>, %arg3: memref<1x2xf32, #tpu.memory_space<vmem>>, %arg4: memref<512x2xf32, #tpu.memory_space<vmem>>) attributes {dimension_semantics = [#tpu.dimension_semantics<parallel>], iteration_bounds = array<i64: 2>, scalar_prefetch = 0 : i64, scratch_operands = 0 : i64, tpu.core_type = #tpu.core_type<tc>, window_params = [{transform_indices = @transform_0, window_bounds = array<i64: 512, 32>}, {pipeline_mode = #tpu.pipeline_mode<synchronous>, transform_indices = @transform_1, window_bounds = array<i64: 2, 32>}, {pipeline_mode = #tpu.pipeline_mode<synchronous>, transform_indices = @transform_2, window_bounds = array<i64: 1, 2>}, {transform_indices = @transform_3, window_bounds = array<i64: 512, 2>}]} {
    %c0 = arith.constant 0 : index
    %c0_0 = arith.constant 0 : index
    %0 = vector.load %arg1[%c0, %c0_0] : memref<512x32xf32, #tpu.memory_space<vmem>>, vector<512x32xf32>
    %c0_1 = arith.constant 0 : index
    %c0_2 = arith.constant 0 : index
    %1 = vector.load %arg2[%c0_1, %c0_2] : memref<2x32xf32, #tpu.memory_space<vmem>>, vector<2x32xf32>
    %c0_3 = arith.constant 0 : index
    %c0_4 = arith.constant 0 : index
    %2 = vector.load %arg3[%c0_3, %c0_4] : memref<1x2xf32, #tpu.memory_space<vmem>>, vector<1x2xf32>
    %cst = arith.constant dense<0.000000e+00> : vector<512x2xf32>
    %3 = tpu.matmul %0, %1, %cst {dimension_numbers = #tpu.dot_dimension_numbers<[1], [1], [0], [0], [0, 0, 1, 0], [], []>} : vector<512x32xf32>, vector<2x32xf32>, vector<512x2xf32> -> vector<512x2xf32>
    %4 = vector.broadcast %2 : vector<1x2xf32> to vector<512x2xf32>
    %5 = arith.addf %3, %4 : vector<512x2xf32>
    %c0_5 = arith.constant 0 : index
    %c0_6 = arith.constant 0 : index
    %6 = vector.load %arg4[%c0_5, %c0_6] : memref<512x2xf32, #tpu.memory_space<vmem>>, vector<512x2xf32>
    tpu.vector_store %arg4[%c0_5, %c0_6], %5 {strides = array<i32>} : memref<512x2xf32, #tpu.memory_space<vmem>>, vector<512x2xf32>,
    return
  }
  func.func @transform_0(%arg0: i32) -> (i32, i32) {
    %c0_i32 = arith.constant 0 : i32
    %c0_i32_0 = arith.constant 0 : i32
    return %arg0, %c0_i32 : i32, i32
  }
  func.func @transform_1(%arg0: i32) -> (i32, i32) {
    %c0_i32 = arith.constant 0 : i32
    %c0_i32_0 = arith.constant 0 : i32
    %c0_i32_1 = arith.constant 0 : i32
    return %c0_i32, %c0_i32_0 : i32, i32
  }
  func.func @transform_2(%arg0: i32) -> (i32, i32) {
    %c0_i32 = arith.constant 0 : i32
    %c0_i32_0 = arith.constant 0 : i32
    %c0_i32_1 = arith.constant 0 : i32
    return %c0_i32, %c0_i32_0 : i32, i32
  }
  func.func @transform_3(%arg0: i32) -> (i32, i32) {
    %c0_i32 = arith.constant 0 : i32
    %c0_i32_0 = arith.constant 0 : i32
    return %arg0, %c0_i32 : i32, i32
  }
}

</mosaic_0001>

<llo_original>
// kernel: tpu_custom_call.1
$region0: #{tpu_custom_call.1}
  #allocation0 [shape = 'u32[]', space=smem, size = 0x4, offset = 0x4, fixed_abs, tag = 'smem constant byte address 0x4 - core index']
  #allocation1 [shape = 'u32[72,128]{1,0:T(1,128)}', space=vmem, size = 0x9000, scoped, tag = 'internal scratch']
  %s0 = inlined_call_operand.vmem [shape: f32[1024,32], index: 0, kind: input, shape index: {}]
  %s1 = inlined_call_operand.vmem [shape: f32[2,32], index: 1, kind: input, shape index: {}]
  %s2 = inlined_call_operand.vmem [shape: f32[1,2], index: 2, kind: input, shape index: {}]
  %s3 = inlined_call_operand.vmem [shape: f32[1024,2], index: 3, kind: output, shape index: {}]
  %s4 = sld [smem:[#allocation0]]
  $region45: #{tpu_custom_call.1} parent=0
    _
  %s6 = ssub.s32 1, %s4
  %s7 = scalar_select 0, %s6, %s4
  loop: start=0, step=1, limit=4
  $region2: #{tpu_custom_call.1} parent=0 // loop_pre_header
    _
  $region3: #{tpu_custom_call.1} parent=0 // loop_header
    %s9 = sphi 0, %s13
    %p10 = scmp.ge.s32.totalorder %s9, 4
    %s19 = sphi 0, %s21
    %s22 = sphi 0, %s19
    %s23 = sphi 0, %s22
    %s39 = sphi 0, %s23
    %s43 = sphi 0, %s43
    %s45 = sphi 0, %s43
    %s46 = sphi 0, %s45
    %s60 = sphi 0, %s46
    %s64 = sphi 0, %s64
    %s66 = sphi 0, %s64
    %s67 = sphi 0, %s66
    %s81 = sphi 0, %s67
    %s87 = sphi 0, %s89
    %s90 = sphi 0, %s87
    %s91 = sphi 0, %s90
    %s107 = sphi 0, %s91
  $region4: #{tpu_custom_call.1} parent=0 // loop_header_branch
    %12 = sbr.rel (%p10) target = $region8
  $region5: #{tpu_custom_call.1} parent=0 // loop_body
    %s14 = ssub.s32 %s9, 1
    %s15 = ssub.s32 %s9, 2
    %s16 = sadd.s32 %s9, 1
    %s17 = ssub.s32 %s9, %s16
    %p18 = scmp.eq.s32.totalorder %s17, 0
    %s20 = sadd.s32 %s19, 1
    %s21 = scalar_select %p18, %s19, %s20
    %p24 = pneg %p18
    %p25 = scmp.eq.s32.totalorder %s9, 1
    %p26 = por %p24, %p25
    %p27 = scmp.ne.s32.totalorder %s19, %s22
    %p28 = scmp.eq.s32.totalorder %s9, 0
    %p29 = por %p27, %p28
    %p30 = scmp.ne.s32.totalorder %s19, %s22
    %p31 = scmp.eq.s32.totalorder %s14, 1
    %p32 = por %p30, %p31
    %p33 = scmp.ne.s32.totalorder %s22, %s23
    %p34 = scmp.eq.s32.totalorder %s14, 0
    %p35 = por %p33, %p34
    %p36 = scmp.ne.s32.totalorder %s22, %s23
    %p37 = scmp.eq.s32.totalorder %s15, 1
    %p38 = por %p36, %p37
    %p40 = scmp.ne.s32.totalorder %s23, %s39
    %p41 = scmp.eq.s32.totalorder %s15, 0
    %p42 = por %p40, %p41
    %s44 = sadd.s32 %s43, 1
    %p47 = scmp.eq.s32.totalorder %s9, 1
    %p48 = scmp.ne.s32.totalorder %s43, %s45
    %p49 = scmp.eq.s32.totalorder %s9, 0
    %p50 = por %p48, %p49
    %p51 = scmp.ne.s32.totalorder %s43, %s45
    %p52 = scmp.eq.s32.totalorder %s14, 1
    %p53 = por %p51, %p52
    %p54 = scmp.ne.s32.totalorder %s45, %s46
    %p55 = scmp.eq.s32.totalorder %s14, 0
    %p56 = por %p54, %p55
    %p57 = scmp.ne.s32.totalorder %s45, %s46
    %p58 = scmp.eq.s32.totalorder %s15, 1
    %p59 = por %p57, %p58
    %p61 = scmp.ne.s32.totalorder %s46, %s60
    %p62 = scmp.eq.s32.totalorder %s15, 0
    %p63 = por %p61, %p62
    %s65 = sadd.s32 %s64, 1
    %p68 = scmp.eq.s32.totalorder %s9, 1
    %p69 = scmp.ne.s32.totalorder %s64, %s66
    %p70 = scmp.eq.s32.totalorder %s9, 0
    %p71 = por %p69, %p70
    %p72 = scmp.ne.s32.totalorder %s64, %s66
    %p73 = scmp.eq.s32.totalorder %s14, 1
    %p74 = por %p72, %p73
    %p75 = scmp.ne.s32.totalorder %s66, %s67
    %p76 = scmp.eq.s32.totalorder %s14, 0
    %p77 = por %p75, %p76
    %p78 = scmp.ne.s32.totalorder %s66, %s67
    %p79 = scmp.eq.s32.totalorder %s15, 1
    %p80 = por %p78, %p79
    %p82 = scmp.ne.s32.totalorder %s67, %s81
    %p83 = scmp.eq.s32.totalorder %s15, 0
    %p84 = por %p82, %p83
    %s85 = ssub.s32 %s9, %s16
    %p86 = scmp.eq.s32.totalorder %s85, 0
    %s88 = sadd.s32 %s87, 1
    %s89 = scalar_select %p86, %s87, %s88
    %p92 = pneg %p86
    %p93 = scmp.eq.s32.totalorder %s9, 1
    %p94 = por %p92, %p93
    %p95 = scmp.ne.s32.totalorder %s87, %s90
    %p96 = scmp.eq.s32.totalorder %s9, 0
    %p97 = por %p95, %p96
    %p98 = scmp.ne.s32.totalorder %s87, %s90
    %p99 = scmp.eq.s32.totalorder %s14, 1
    %p100 = por %p98, %p99
    %p101 = scmp.ne.s32.totalorder %s90, %s91
    %p102 = scmp.eq.s32.totalorder %s14, 0
    %p103 = por %p101, %p102
    %p104 = scmp.ne.s32.totalorder %s90, %s91
    %p105 = scmp.eq.s32.totalorder %s15, 1
    %p106 = por %p104, %p105
    %p108 = scmp.ne.s32.totalorder %s91, %s107
    %p109 = scmp.eq.s32.totalorder %s15, 0
    %p110 = por %p108, %p109
    %p111 = scmp.le.s32.totalorder 1, %s9
    %p112 = scmp.lt.s32.totalorder %s9, 3
    %p113 = pnand %p111, %p112
    %p114 = pneg %p113
    // Predicated region
    $region9: #{tpu_custom_call.1} parent=5 // pred_check
      _
    $region10: #{tpu_custom_call.1} parent=5 // pred_check_branch
      %116 = sbr.rel (%p113) target = $region12
    $region11: #{tpu_custom_call.1} parent=5 // pred_region
      %s117 = ssub.s32 %s9, 1
      // Predicated region
      $region13: #{tpu_custom_call.1} parent=11 // pred_check
        %p118 = pneg %p56
      $region14: #{tpu_custom_call.1} parent=11 // pred_check_branch
        %120 = sbr.rel (%p118) target = $region16
      $region15: #{tpu_custom_call.1} parent=11 // pred_region
        _
      $region16: #{tpu_custom_call.1} parent=11 // pred_fallthru
        _
      // Predicated region
      $region17: #{tpu_custom_call.1} parent=11 // pred_check
        %p121 = pneg %p77
      $region18: #{tpu_custom_call.1} parent=11 // pred_check_branch
        %123 = sbr.rel (%p121) target = $region20
      $region19: #{tpu_custom_call.1} parent=11 // pred_region
        _
      $region20: #{tpu_custom_call.1} parent=11 // pred_fallthru
        _
    $region12: #{tpu_custom_call.1} parent=5 // pred_fallthru
      _
    %p124 = scmp.lt.s32.totalorder %s9, 2
    // Predicated region
    $region21: #{tpu_custom_call.1} parent=5 // pred_check
      %p125 = pneg %p124
    $region22: #{tpu_custom_call.1} parent=5 // pred_check_branch
      %127 = sbr.rel (%p125) target = $region24
    $region23: #{tpu_custom_call.1} parent=5 // pred_region
      // Predicated region
      $region25: #{tpu_custom_call.1} parent=23 // pred_check
        %p128 = pneg %p29
      $region26: #{tpu_custom_call.1} parent=23 // pred_check_branch
        %130 = sbr.rel (%p128) target = $region28
      $region27: #{tpu_custom_call.1} parent=23 // pred_region
        %s131 = smul.u32 64, %s9
        %p132 = scmp.lt.s32.totalorder %s131, 127
        %s133 = scalar_select %p132, %s131, 127
        %s134 = smul.addr %s133, 8
        %s135 = scalar_lea.vmem %s0, %s134
        %s136 = smul.u32 64, %s9
      $region28: #{tpu_custom_call.1} parent=23 // pred_fallthru
        _
    $region24: #{tpu_custom_call.1} parent=5 // pred_fallthru
      _
    %p137 = scmp.le.s32.totalorder 1, %s9
    %p138 = scmp.lt.s32.totalorder %s9, 3
    %p139 = pnand %p137, %p138
    %p140 = pneg %p139
    // Predicated region
    $region29: #{tpu_custom_call.1} parent=5 // pred_check
      _
    $region30: #{tpu_custom_call.1} parent=5 // pred_check_branch
      %142 = sbr.rel (%p139) target = $region32
    $region31: #{tpu_custom_call.1} parent=5 // pred_region
      %s143 = ssub.s32 %s9, 1
      %s144 = smul.u32 64, %s14
      %p145 = scmp.lt.s32.totalorder %s144, 127
      %s146 = scalar_select %p145, %s144, 127
      %s147 = smul.addr %s146, 8
      %s148 = scalar_lea.vmem %s0, %s147
      %p149 = pneg %p35
      %p150 = pneg %p32
      %p151 = pneg %p56
      %p152 = pneg %p53
      %p153 = pneg %p77
      %p154 = pneg %p74
      %p155 = pneg %p103
      %p156 = pneg %p100
      %s157 = smul.u32 64, %s14
      %p158 = scmp.lt.s32.totalorder %s157, 127
      %s159 = scalar_select %p158, %s157, 127
      %s160 = smul.addr %s159, 8
      %s161 = scalar_lea.vmem %s3, %s160
      %s162 = smul.u32 64, %s14
      %p163 = scmp.lt.s32.totalorder %s162, 127
      %s164 = scalar_select %p163, %s162, 127
      %s165 = smul.addr %s164, 8
      %s166 = scalar_lea.vmem %s0, %s165
      %s167 = smul.u32 64, %s14
      %s168 = smul.u32 64, %s14
      %p169 = scmp.lt.s32.totalorder %s168, 127
      %s170 = scalar_select %p169, %s168, 127
      %s171 = smul.addr %s170, 8
      %s172 = scalar_lea.vmem %s3, %s171
      %s173 = smul.u32 64, %s14
      %v174 = vld [vmem:[%s166] sm:$0xff]
      %v175 = vld [vmem:[%s166 + $0x8] sm:$0xff]
      %v176 = vld [vmem:[%s166 + $0x10] sm:$0xff]
      %v177 = vld [vmem:[%s166 + $0x18] sm:$0xff]
      %v178 = vld [vmem:[%s166 + $0x20] sm:$0xff]
      %v179 = vld [vmem:[%s166 + $0x28] sm:$0xff]
      %v180 = vld [vmem:[%s166 + $0x30] sm:$0xff]
      %v181 = vld [vmem:[%s166 + $0x38] sm:$0xff]
      %v182 = vld [vmem:[%s166 + $0x40] sm:$0xff]
      %v183 = vld [vmem:[%s166 + $0x48] sm:$0xff]
      %v184 = vld [vmem:[%s166 + $0x50] sm:$0xff]
      %v185 = vld [vmem:[%s166 + $0x58] sm:$0xff]
      %v186 = vld [vmem:[%s166 + $0x60] sm:$0xff]
      %v187 = vld [vmem:[%s166 + $0x68] sm:$0xff]
      %v188 = vld [vmem:[%s166 + $0x70] sm:$0xff]
      %v189 = vld [vmem:[%s166 + $0x78] sm:$0xff]
      %v190 = vld [vmem:[%s166 + $0x80] sm:$0xff]
      %v191 = vld [vmem:[%s166 + $0x88] sm:$0xff]
      %v192 = vld [vmem:[%s166 + $0x90] sm:$0xff]
      %v193 = vld [vmem:[%s166 + $0x98] sm:$0xff]
      %v194 = vld [vmem:[%s166 + $0xa0] sm:$0xff]
      %v195 = vld [vmem:[%s166 + $0xa8] sm:$0xff]
      %v196 = vld [vmem:[%s166 + $0xb0] sm:$0xff]
      %v197 = vld [vmem:[%s166 + $0xb8] sm:$0xff]
      %v198 = vld [vmem:[%s166 + $0xc0] sm:$0xff]
      %v199 = vld [vmem:[%s166 + $0xc8] sm:$0xff]
      %v200 = vld [vmem:[%s166 + $0xd0] sm:$0xff]
      %v201 = vld [vmem:[%s166 + $0xd8] sm:$0xff]
      %v202 = vld [vmem:[%s166 + $0xe0] sm:$0xff]
      %v203 = vld [vmem:[%s166 + $0xe8] sm:$0xff]
      %v204 = vld [vmem:[%s166 + $0xf0] sm:$0xff]
      %v205 = vld [vmem:[%s166 + $0xf8] sm:$0xff]
      %v206 = vld [vmem:[%s166 + $0x100] sm:$0xff]
      %v207 = vld [vmem:[%s166 + $0x108] sm:$0xff]
      %v208 = vld [vmem:[%s166 + $0x110] sm:$0xff]
      %v209 = vld [vmem:[%s166 + $0x118] sm:$0xff]
      %v210 = vld [vmem:[%s166 + $0x120] sm:$0xff]
      %v211 = vld [vmem:[%s166 + $0x128] sm:$0xff]
      %v212 = vld [vmem:[%s166 + $0x130] sm:$0xff]
      %v213 = vld [vmem:[%s166 + $0x138] sm:$0xff]
      %v214 = vld [vmem:[%s166 + $0x140] sm:$0xff]
      %v215 = vld [vmem:[%s166 + $0x148] sm:$0xff]
      %v216 = vld [vmem:[%s166 + $0x150] sm:$0xff]
      %v217 = vld [vmem:[%s166 + $0x158] sm:$0xff]
      %v218 = vld [vmem:[%s166 + $0x160] sm:$0xff]
      %v219 = vld [vmem:[%s166 + $0x168] sm:$0xff]
      %v220 = vld [vmem:[%s166 + $0x170] sm:$0xff]
      %v221 = vld [vmem:[%s166 + $0x178] sm:$0xff]
      %v222 = vld [vmem:[%s166 + $0x180] sm:$0xff]
      %v223 = vld [vmem:[%s166 + $0x188] sm:$0xff]
      %v224 = vld [vmem:[%s166 + $0x190] sm:$0xff]
      %v225 = vld [vmem:[%s166 + $0x198] sm:$0xff]
      %v226 = vld [vmem:[%s166 + $0x1a0] sm:$0xff]
      %v227 = vld [vmem:[%s166 + $0x1a8] sm:$0xff]
      %v228 = vld [vmem:[%s166 + $0x1b0] sm:$0xff]
      %v229 = vld [vmem:[%s166 + $0x1b8] sm:$0xff]
      %v230 = vld [vmem:[%s166 + $0x1c0] sm:$0xff]
      %v231 = vld [vmem:[%s166 + $0x1c8] sm:$0xff]
      %v232 = vld [vmem:[%s166 + $0x1d0] sm:$0xff]
      %v233 = vld [vmem:[%s166 + $0x1d8] sm:$0xff]
      %v234 = vld [vmem:[%s166 + $0x1e0] sm:$0xff]
      %v235 = vld [vmem:[%s166 + $0x1e8] sm:$0xff]
      %v236 = vld [vmem:[%s166 + $0x1f0] sm:$0xff]
      %v237 = vld [vmem:[%s166 + $0x1f8] sm:$0xff]
      %v238 = vld [vmem:[%s1] sm:$0x3]
      %v239 = vld [vmem:[%s2] sm:$0x1]
      %v241 = vperm.slane %v239, 0
      %vm243 = vcmask 261120
      %v245 = vsel %vm243, %v174, 0
      %v248 = vsel %vm243, %v175, 0
      %v251 = vsel %vm243, %v176, 0
      %v254 = vsel %vm243, %v177, 0
      %v257 = vsel %vm243, %v178, 0
      %v260 = vsel %vm243, %v179, 0
      %v263 = vsel %vm243, %v180, 0
      %v266 = vsel %vm243, %v181, 0
      %v269 = vsel %vm243, %v182, 0
      %v272 = vsel %vm243, %v183, 0
      %v275 = vsel %vm243, %v184, 0
      %v278 = vsel %vm243, %v185, 0
      %v281 = vsel %vm243, %v186, 0
      %v284 = vsel %vm243, %v187, 0
      %v287 = vsel %vm243, %v188, 0
      %v290 = vsel %vm243, %v189, 0
      %v293 = vsel %vm243, %v190, 0
      %v296 = vsel %vm243, %v191, 0
      %v299 = vsel %vm243, %v192, 0
      %v302 = vsel %vm243, %v193, 0
      %v305 = vsel %vm243, %v194, 0
      %v308 = vsel %vm243, %v195, 0
      %v311 = vsel %vm243, %v196, 0
      %v314 = vsel %vm243, %v197, 0
      %v317 = vsel %vm243, %v198, 0
      %v320 = vsel %vm243, %v199, 0
      %v323 = vsel %vm243, %v200, 0
      %v326 = vsel %vm243, %v201, 0
      %v329 = vsel %vm243, %v202, 0
      %v332 = vsel %vm243, %v203, 0
      %v335 = vsel %vm243, %v204, 0
      %v338 = vsel %vm243, %v205, 0
      %v341 = vsel %vm243, %v206, 0
      %v344 = vsel %vm243, %v207, 0
      %v347 = vsel %vm243, %v208, 0
      %v350 = vsel %vm243, %v209, 0
      %v353 = vsel %vm243, %v210, 0
      %v356 = vsel %vm243, %v211, 0
      %v359 = vsel %vm243, %v212, 0
      %v362 = vsel %vm243, %v213, 0
      %v365 = vsel %vm243, %v214, 0
      %v368 = vsel %vm243, %v215, 0
      %v371 = vsel %vm243, %v216, 0
      %v374 = vsel %vm243, %v217, 0
      %v377 = vsel %vm243, %v218, 0
      %v380 = vsel %vm243, %v219, 0
      %v383 = vsel %vm243, %v220, 0
      %v386 = vsel %vm243, %v221, 0
      %v389 = vsel %vm243, %v222, 0
      %v392 = vsel %vm243, %v223, 0
      %v395 = vsel %vm243, %v224, 0
      %v398 = vsel %vm243, %v225, 0
      %v401 = vsel %vm243, %v226, 0
      %v404 = vsel %vm243, %v227, 0
      %v407 = vsel %vm243, %v228, 0
      %v410 = vsel %vm243, %v229, 0
      %v413 = vsel %vm243, %v230, 0
      %v416 = vsel %vm243, %v231, 0
      %v419 = vsel %vm243, %v232, 0
      %v422 = vsel %vm243, %v233, 0
      %v425 = vsel %vm243, %v234, 0
      %v428 = vsel %vm243, %v235, 0
      %v431 = vsel %vm243, %v236, 0
      %v434 = vsel %vm243, %v237, 0
      %v437 = vsel %vm243, %v238, 0
      %439 = vmatpush.xpose.msra.mxu0 0.0
      %440 = vmatpush.xpose.msra.mxu0 0.0
      %441 = vmatpush.xpose.msra.mxu0 0.0
      %442 = vmatpush.xpose.msra.mxu0 0.0
      %443 = vmatpush.xpose.msra.mxu0 0.0
      %444 = vmatpush.xpose.msra.mxu0 0.0
      %445 = vmatpush.xpose.msra.mxu0 0.0
      %446 = vmatpush.xpose.msra.mxu0 0.0
      %447 = vmatpush.xpose.msra.mxu0 0.0
      %448 = vmatpush.xpose.msra.mxu0 0.0
      %449 = vmatpush.xpose.msra.mxu0 0.0
      %450 = vmatpush.xpose.msra.mxu0 0.0
      %451 = vmatpush.xpose.msra.mxu0 0.0
      %452 = vmatpush.xpose.msra.mxu0 0.0
      %453 = vmatpush.xpose.msra.mxu0 0.0
      %454 = vmatpush.xpose.msra.mxu0 %v437
      %455 = vmatmul.f32.gmra.mxu0 %v245
      %v456 = vpop.f32.mrf.mxu0
      %v457 = vadd.f32 %v241, %v456
      %458 = vmatmul.f32.gmra.mxu0 %v248
      %v459 = vpop.f32.mrf.mxu0
      %v460 = vadd.f32 %v241, %v459
      %461 = vmatmul.f32.gmra.mxu0 %v251
      %v462 = vpop.f32.mrf.mxu0
      %v463 = vadd.f32 %v241, %v462
      %464 = vmatmul.f32.gmra.mxu0 %v254
      %v465 = vpop.f32.mrf.mxu0
      %v466 = vadd.f32 %v241, %v465
      %467 = vmatmul.f32.gmra.mxu0 %v257
      %v468 = vpop.f32.mrf.mxu0
      %v469 = vadd.f32 %v241, %v468
      %470 = vmatmul.f32.gmra.mxu0 %v260
      %v471 = vpop.f32.mrf.mxu0
      %v472 = vadd.f32 %v241, %v471
      %473 = vmatmul.f32.gmra.mxu0 %v263
      %v474 = vpop.f32.mrf.mxu0
      %v475 = vadd.f32 %v241, %v474
      %476 = vmatmul.f32.gmra.mxu0 %v266
      %v477 = vpop.f32.mrf.mxu0
      %v478 = vadd.f32 %v241, %v477
      %479 = vmatmul.f32.gmra.mxu0 %v269
      %v480 = vpop.f32.mrf.mxu0
      %v481 = vadd.f32 %v241, %v480
      %482 = vmatmul.f32.gmra.mxu0 %v272
      %v483 = vpop.f32.mrf.mxu0
      %v484 = vadd.f32 %v241, %v483
      %485 = vmatmul.f32.gmra.mxu0 %v275
      %v486 = vpop.f32.mrf.mxu0
      %v487 = vadd.f32 %v241, %v486
      %488 = vmatmul.f32.gmra.mxu0 %v278
      %v489 = vpop.f32.mrf.mxu0
      %v490 = vadd.f32 %v241, %v489
      %491 = vmatmul.f32.gmra.mxu0 %v281
      %v492 = vpop.f32.mrf.mxu0
      %v493 = vadd.f32 %v241, %v492
      %494 = vmatmul.f32.gmra.mxu0 %v284
      %v495 = vpop.f32.mrf.mxu0
      %v496 = vadd.f32 %v241, %v495
      %497 = vmatmul.f32.gmra.mxu0 %v287
      %v498 = vpop.f32.mrf.mxu0
      %v499 = vadd.f32 %v241, %v498
      %500 = vmatmul.f32.gmra.mxu0 %v290
      %v501 = vpop.f32.mrf.mxu0
      %v502 = vadd.f32 %v241, %v501
      %503 = vmatmul.f32.gmra.mxu0 %v293
      %v504 = vpop.f32.mrf.mxu0
      %v505 = vadd.f32 %v241, %v504
      %506 = vmatmul.f32.gmra.mxu0 %v296
      %v507 = vpop.f32.mrf.mxu0
      %v508 = vadd.f32 %v241, %v507
      %509 = vmatmul.f32.gmra.mxu0 %v299
      %v510 = vpop.f32.mrf.mxu0
      %v511 = vadd.f32 %v241, %v510
      %512 = vmatmul.f32.gmra.mxu0 %v302
      %v513 = vpop.f32.mrf.mxu0
      %v514 = vadd.f32 %v241, %v513
      %515 = vmatmul.f32.gmra.mxu0 %v305
      %v516 = vpop.f32.mrf.mxu0
      %v517 = vadd.f32 %v241, %v516
      %518 = vmatmul.f32.gmra.mxu0 %v308
      %v519 = vpop.f32.mrf.mxu0
      %v520 = vadd.f32 %v241, %v519
      %521 = vmatmul.f32.gmra.mxu0 %v311
      %v522 = vpop.f32.mrf.mxu0
      %v523 = vadd.f32 %v241, %v522
      %524 = vmatmul.f32.gmra.mxu0 %v314
      %v525 = vpop.f32.mrf.mxu0
      %v526 = vadd.f32 %v241, %v525
      %527 = vmatmul.f32.gmra.mxu0 %v317
      %v528 = vpop.f32.mrf.mxu0
      %v529 = vadd.f32 %v241, %v528
      %530 = vmatmul.f32.gmra.mxu0 %v320
      %v531 = vpop.f32.mrf.mxu0
      %v532 = vadd.f32 %v241, %v531
      %533 = vmatmul.f32.gmra.mxu0 %v323
      %v534 = vpop.f32.mrf.mxu0
      %v535 = vadd.f32 %v241, %v534
      %536 = vmatmul.f32.gmra.mxu0 %v326
      %v537 = vpop.f32.mrf.mxu0
      %v538 = vadd.f32 %v241, %v537
      %539 = vmatmul.f32.gmra.mxu0 %v329
      %v540 = vpop.f32.mrf.mxu0
      %v541 = vadd.f32 %v241, %v540
      %542 = vmatmul.f32.gmra.mxu0 %v332
      %v543 = vpop.f32.mrf.mxu0
      %v544 = vadd.f32 %v241, %v543
      %545 = vmatmul.f32.gmra.mxu0 %v335
      %v546 = vpop.f32.mrf.mxu0
      %v547 = vadd.f32 %v241, %v546
      %548 = vmatmul.f32.gmra.mxu0 %v338
      %v549 = vpop.f32.mrf.mxu0
      %v550 = vadd.f32 %v241, %v549
      %551 = vmatmul.f32.gmra.mxu0 %v341
      %v552 = vpop.f32.mrf.mxu0
      %v553 = vadd.f32 %v241, %v552
      %554 = vmatmul.f32.gmra.mxu0 %v344
      %v555 = vpop.f32.mrf.mxu0
      %v556 = vadd.f32 %v241, %v555
      %557 = vmatmul.f32.gmra.mxu0 %v347
      %v558 = vpop.f32.mrf.mxu0
      %v559 = vadd.f32 %v241, %v558
      %560 = vmatmul.f32.gmra.mxu0 %v350
      %v561 = vpop.f32.mrf.mxu0
      %v562 = vadd.f32 %v241, %v561
      %563 = vmatmul.f32.gmra.mxu0 %v353
      %v564 = vpop.f32.mrf.mxu0
      %v565 = vadd.f32 %v241, %v564
      %566 = vmatmul.f32.gmra.mxu0 %v356
      %v567 = vpop.f32.mrf.mxu0
      %v568 = vadd.f32 %v241, %v567
      %569 = vmatmul.f32.gmra.mxu0 %v359
      %v570 = vpop.f32.mrf.mxu0
      %v571 = vadd.f32 %v241, %v570
      %572 = vmatmul.f32.gmra.mxu0 %v362
      %v573 = vpop.f32.mrf.mxu0
      %v574 = vadd.f32 %v241, %v573
      %575 = vmatmul.f32.gmra.mxu0 %v365
      %v576 = vpop.f32.mrf.mxu0
      %v577 = vadd.f32 %v241, %v576
      %578 = vmatmul.f32.gmra.mxu0 %v368
      %v579 = vpop.f32.mrf.mxu0
      %v580 = vadd.f32 %v241, %v579
      %581 = vmatmul.f32.gmra.mxu0 %v371
      %v582 = vpop.f32.mrf.mxu0
      %v583 = vadd.f32 %v241, %v582
      %584 = vmatmul.f32.gmra.mxu0 %v374
      %v585 = vpop.f32.mrf.mxu0
      %v586 = vadd.f32 %v241, %v585
      %587 = vmatmul.f32.gmra.mxu0 %v377
      %v588 = vpop.f32.mrf.mxu0
      %v589 = vadd.f32 %v241, %v588
      %590 = vmatmul.f32.gmra.mxu0 %v380
      %v591 = vpop.f32.mrf.mxu0
      %v592 = vadd.f32 %v241, %v591
      %593 = vmatmul.f32.gmra.mxu0 %v383
      %v594 = vpop.f32.mrf.mxu0
      %v595 = vadd.f32 %v241, %v594
      %596 = vmatmul.f32.gmra.mxu0 %v386
      %v597 = vpop.f32.mrf.mxu0
      %v598 = vadd.f32 %v241, %v597
      %599 = vmatmul.f32.gmra.mxu0 %v389
      %v600 = vpop.f32.mrf.mxu0
      %v601 = vadd.f32 %v241, %v600
      %602 = vmatmul.f32.gmra.mxu0 %v392
      %v603 = vpop.f32.mrf.mxu0
      %v604 = vadd.f32 %v241, %v603
      %605 = vmatmul.f32.gmra.mxu0 %v395
      %v606 = vpop.f32.mrf.mxu0
      %v607 = vadd.f32 %v241, %v606
      %608 = vmatmul.f32.gmra.mxu0 %v398
      %v609 = vpop.f32.mrf.mxu0
      %v610 = vadd.f32 %v241, %v609
      %611 = vmatmul.f32.gmra.mxu0 %v401
      %v612 = vpop.f32.mrf.mxu0
      %v613 = vadd.f32 %v241, %v612
      %614 = vmatmul.f32.gmra.mxu0 %v404
      %v615 = vpop.f32.mrf.mxu0
      %v616 = vadd.f32 %v241, %v615
      %617 = vmatmul.f32.gmra.mxu0 %v407
      %v618 = vpop.f32.mrf.mxu0
      %v619 = vadd.f32 %v241, %v618
      %620 = vmatmul.f32.gmra.mxu0 %v410
      %v621 = vpop.f32.mrf.mxu0
      %v622 = vadd.f32 %v241, %v621
      %623 = vmatmul.f32.gmra.mxu0 %v413
      %v624 = vpop.f32.mrf.mxu0
      %v625 = vadd.f32 %v241, %v624
      %626 = vmatmul.f32.gmra.mxu0 %v416
      %v627 = vpop.f32.mrf.mxu0
      %v628 = vadd.f32 %v241, %v627
      %629 = vmatmul.f32.gmra.mxu0 %v419
      %v630 = vpop.f32.mrf.mxu0
      %v631 = vadd.f32 %v241, %v630
      %632 = vmatmul.f32.gmra.mxu0 %v422
      %v633 = vpop.f32.mrf.mxu0
      %v634 = vadd.f32 %v241, %v633
      %635 = vmatmul.f32.gmra.mxu0 %v425
      %v636 = vpop.f32.mrf.mxu0
      %v637 = vadd.f32 %v241, %v636
      %638 = vmatmul.f32.gmra.mxu0 %v428
      %v639 = vpop.f32.mrf.mxu0
      %v640 = vadd.f32 %v241, %v639
      %641 = vmatmul.f32.gmra.mxu0 %v431
      %v642 = vpop.f32.mrf.mxu0
      %v643 = vadd.f32 %v241, %v642
      %644 = vmatmul.f32.gmra.mxu0 %v434
      %v645 = vpop.f32.mrf.mxu0
      %v646 = vadd.f32 %v241, %v645
      %647 = vdwg.mxu0
      %vm648 = vcmask 15360
      %649 = vst.msk [vmem:[%s172] sm:$0xff] %vm648, %v457
      %650 = vst.msk [vmem:[%s172 + $0x8] sm:$0xff] %vm648, %v460
      %651 = vst.msk [vmem:[%s172 + $0x10] sm:$0xff] %vm648, %v463
      %652 = vst.msk [vmem:[%s172 + $0x18] sm:$0xff] %vm648, %v466
      %653 = vst.msk [vmem:[%s172 + $0x20] sm:$0xff] %vm648, %v469
      %654 = vst.msk [vmem:[%s172 + $0x28] sm:$0xff] %vm648, %v472
      %655 = vst.msk [vmem:[%s172 + $0x30] sm:$0xff] %vm648, %v475
      %656 = vst.msk [vmem:[%s172 + $0x38] sm:$0xff] %vm648, %v478
      %657 = vst.msk [vmem:[%s172 + $0x40] sm:$0xff] %vm648, %v481
      %658 = vst.msk [vmem:[%s172 + $0x48] sm:$0xff] %vm648, %v484
      %659 = vst.msk [vmem:[%s172 + $0x50] sm:$0xff] %vm648, %v487
      %660 = vst.msk [vmem:[%s172 + $0x58] sm:$0xff] %vm648, %v490
      %661 = vst.msk [vmem:[%s172 + $0x60] sm:$0xff] %vm648, %v493
      %662 = vst.msk [vmem:[%s172 + $0x68] sm:$0xff] %vm648, %v496
      %663 = vst.msk [vmem:[%s172 + $0x70] sm:$0xff] %vm648, %v499
      %664 = vst.msk [vmem:[%s172 + $0x78] sm:$0xff] %vm648, %v502
      %665 = vst.msk [vmem:[%s172 + $0x80] sm:$0xff] %vm648, %v505
      %666 = vst.msk [vmem:[%s172 + $0x88] sm:$0xff] %vm648, %v508
      %667 = vst.msk [vmem:[%s172 + $0x90] sm:$0xff] %vm648, %v511
      %668 = vst.msk [vmem:[%s172 + $0x98] sm:$0xff] %vm648, %v514
      %669 = vst.msk [vmem:[%s172 + $0xa0] sm:$0xff] %vm648, %v517
      %670 = vst.msk [vmem:[%s172 + $0xa8] sm:$0xff] %vm648, %v520
      %671 = vst.msk [vmem:[%s172 + $0xb0] sm:$0xff] %vm648, %v523
      %672 = vst.msk [vmem:[%s172 + $0xb8] sm:$0xff] %vm648, %v526
      %673 = vst.msk [vmem:[%s172 + $0xc0] sm:$0xff] %vm648, %v529
      %674 = vst.msk [vmem:[%s172 + $0xc8] sm:$0xff] %vm648, %v532
      %675 = vst.msk [vmem:[%s172 + $0xd0] sm:$0xff] %vm648, %v535
      %676 = vst.msk [vmem:[%s172 + $0xd8] sm:$0xff] %vm648, %v538
      %677 = vst.msk [vmem:[%s172 + $0xe0] sm:$0xff] %vm648, %v541
      %678 = vst.msk [vmem:[%s172 + $0xe8] sm:$0xff] %vm648, %v544
      %679 = vst.msk [vmem:[%s172 + $0xf0] sm:$0xff] %vm648, %v547
      %680 = vst.msk [vmem:[%s172 + $0xf8] sm:$0xff] %vm648, %v550
      %681 = vst.msk [vmem:[%s172 + $0x100] sm:$0xff] %vm648, %v553
      %682 = vst.msk [vmem:[%s172 + $0x108] sm:$0xff] %vm648, %v556
      %683 = vst.msk [vmem:[%s172 + $0x110] sm:$0xff] %vm648, %v559
      %684 = vst.msk [vmem:[%s172 + $0x118] sm:$0xff] %vm648, %v562
      %685 = vst.msk [vmem:[%s172 + $0x120] sm:$0xff] %vm648, %v565
      %686 = vst.msk [vmem:[%s172 + $0x128] sm:$0xff] %vm648, %v568
      %687 = vst.msk [vmem:[%s172 + $0x130] sm:$0xff] %vm648, %v571
      %688 = vst.msk [vmem:[%s172 + $0x138] sm:$0xff] %vm648, %v574
      %689 = vst.msk [vmem:[%s172 + $0x140] sm:$0xff] %vm648, %v577
      %690 = vst.msk [vmem:[%s172 + $0x148] sm:$0xff] %vm648, %v580
      %691 = vst.msk [vmem:[%s172 + $0x150] sm:$0xff] %vm648, %v583
      %692 = vst.msk [vmem:[%s172 + $0x158] sm:$0xff] %vm648, %v586
      %693 = vst.msk [vmem:[%s172 + $0x160] sm:$0xff] %vm648, %v589
      %694 = vst.msk [vmem:[%s172 + $0x168] sm:$0xff] %vm648, %v592
      %695 = vst.msk [vmem:[%s172 + $0x170] sm:$0xff] %vm648, %v595
      %696 = vst.msk [vmem:[%s172 + $0x178] sm:$0xff] %vm648, %v598
      %697 = vst.msk [vmem:[%s172 + $0x180] sm:$0xff] %vm648, %v601
      %698 = vst.msk [vmem:[%s172 + $0x188] sm:$0xff] %vm648, %v604
      %699 = vst.msk [vmem:[%s172 + $0x190] sm:$0xff] %vm648, %v607
      %700 = vst.msk [vmem:[%s172 + $0x198] sm:$0xff] %vm648, %v610
      %701 = vst.msk [vmem:[%s172 + $0x1a0] sm:$0xff] %vm648, %v613
      %702 = vst.msk [vmem:[%s172 + $0x1a8] sm:$0xff] %vm648, %v616
      %703 = vst.msk [vmem:[%s172 + $0x1b0] sm:$0xff] %vm648, %v619
      %704 = vst.msk [vmem:[%s172 + $0x1b8] sm:$0xff] %vm648, %v622
      %705 = vst.msk [vmem:[%s172 + $0x1c0] sm:$0xff] %vm648, %v625
      %706 = vst.msk [vmem:[%s172 + $0x1c8] sm:$0xff] %vm648, %v628
      %707 = vst.msk [vmem:[%s172 + $0x1d0] sm:$0xff] %vm648, %v631
      %708 = vst.msk [vmem:[%s172 + $0x1d8] sm:$0xff] %vm648, %v634
      %709 = vst.msk [vmem:[%s172 + $0x1e0] sm:$0xff] %vm648, %v637
      %710 = vst.msk [vmem:[%s172 + $0x1e8] sm:$0xff] %vm648, %v640
      %711 = vst.msk [vmem:[%s172 + $0x1f0] sm:$0xff] %vm648, %v643
      %712 = vst.msk [vmem:[%s172 + $0x1f8] sm:$0xff] %vm648, %v646
      %s713 = smul.u32 64, %s14
      %p714 = scmp.lt.s32.totalorder %s713, 127
      %s715 = scalar_select %p714, %s713, 127
      %s716 = smul.addr %s715, 8
      %s717 = scalar_lea.vmem %s3, %s716
      // Predicated region
      $region33: #{tpu_custom_call.1} parent=31 // pred_check
        %p718 = pneg %p100
      $region34: #{tpu_custom_call.1} parent=31 // pred_check_branch
        %720 = sbr.rel (%p718) target = $region36
      $region35: #{tpu_custom_call.1} parent=31 // pred_region
        %s721 = smul.u32 64, %s14
      $region36: #{tpu_custom_call.1} parent=31 // pred_fallthru
        _
    $region32: #{tpu_custom_call.1} parent=5 // pred_fallthru
      _
    %p722 = scmp.le.s32.totalorder 2, %s9
    // Predicated region
    $region37: #{tpu_custom_call.1} parent=5 // pred_check
      %p723 = pneg %p722
    $region38: #{tpu_custom_call.1} parent=5 // pred_check_branch
      %725 = sbr.rel (%p723) target = $region40
    $region39: #{tpu_custom_call.1} parent=5 // pred_region
      %s726 = ssub.s32 %s9, 2
      // Predicated region
      $region41: #{tpu_custom_call.1} parent=39 // pred_check
        %p727 = pneg %p106
      $region42: #{tpu_custom_call.1} parent=39 // pred_check_branch
        %729 = sbr.rel (%p727) target = $region44
      $region43: #{tpu_custom_call.1} parent=39 // pred_region
        %s730 = smul.u32 64, %s15
        %p731 = scmp.lt.s32.totalorder %s730, 127
        %s732 = scalar_select %p731, %s730, 127
        %s733 = smul.addr %s732, 8
        %s734 = scalar_lea.vmem %s3, %s733
      $region44: #{tpu_custom_call.1} parent=39 // pred_fallthru
        _
    $region40: #{tpu_custom_call.1} parent=5 // pred_fallthru
      _
  $region6: #{tpu_custom_call.1} parent=0 // loop_footer
    %s13 = sadd.s32 1, %s9
  $region7: #{tpu_custom_call.1} parent=0 // loop_footer_branch
    %8 = sbr.rel target = $region3
  $region8: #{tpu_custom_call.1} parent=0 // loop_exit
    _

</llo_original>
